<compile_context>
chip_gen: v6e
topology: v6e:2x2x1
jax: 0.10.0
libtpu: 0.0.40
codegen_flags: <defaults>
</compile_context>

<pallas_src>
import jax
import jax.numpy as jnp
from jax.experimental import pallas as pl
from jax.experimental.pallas import tpu as pltpu


# Planes at or below this many bytes use the zero-VMEM pure-DMA broadcast path
# for C == 1; larger planes use the staged (1 read + 3 writes) tiled path.
_SMALL_PLANE_BYTES = 256 * 1024

# Target double-buffered VMEM footprint for the staged C==1 path.  Safe under
# the 16 MiB scoped default (v5e) and well under v7x's 64 MiB physical VMEM.
_VMEM_BUDGET_BYTES = 8 * 1024 * 1024


# ----------------------------------------------------------------------------
# C == 4: drop alpha with ONE contiguous HBM->HBM DMA of channels [0:3].
# ----------------------------------------------------------------------------
def _rgba_drop_alpha_kernel(x_hbm, o_hbm, sem):
    cp = pltpu.make_async_copy(x_hbm.at[pl.ds(0, 3)], o_hbm, sem)
    cp.start()
    cp.wait()


# ----------------------------------------------------------------------------
# C == 1, small planes: zero-VMEM broadcast via three HBM->HBM plane copies.
# ----------------------------------------------------------------------------
def _broadcast_small_kernel(x_hbm, o_hbm, sem):
    copies = []
    for i in range(3):
        cp = pltpu.make_async_copy(x_hbm.at[0], o_hbm.at[i], sem.at[i])
        cp.start()
        copies.append(cp)
    for cp in copies:
        cp.wait()


# ----------------------------------------------------------------------------
# C == 1, large planes: staged/tiled broadcast, 1 HBM read + 3 HBM writes.
# ----------------------------------------------------------------------------
def _broadcast_tiled_kernel(x_ref, o_ref):
    # x_ref: (TH, W) VMEM tile of the single source plane.
    # o_ref: (3, TH, W) VMEM tile of the output; broadcast fills all 3 planes.
    o_ref[...] = jnp.broadcast_to(x_ref[...], o_ref.shape)


def _row_tile(h: int, w: int, itemsize: int) -> int:
    """Row-tile height sized against the double-buffered VMEM budget."""
    # Double-buffered footprint ~= 2 * (1 input + 3 output) * TH * W * itemsize.
    denom = 2 * 4 * w * itemsize
    th = _VMEM_BUDGET_BYTES // max(denom, 1)
    th = max(8, (th // 8) * 8)   # keep a multiple of 8 sublanes
    return min(th, h)            # full H is always a legal block extent


def channel_transform(x: jnp.ndarray) -> jnp.ndarray:
    """Pallas equivalent of ChannelTransform.forward for a (C, H, W) array."""
    if x.ndim != 3:
        raise ValueError(f"Expected 3D tensor (C,H,W), got shape {x.shape}")
    c, h, w = x.shape
    itemsize = jnp.dtype(x.dtype).itemsize
    plane_bytes = h * w * itemsize

    if c == 3:
        # Pass-through: no kernel, no copy (mirrors torch returning x).
        return x

    if c == 4:
        # One contiguous DMA of the first 3 channel planes.
        return pl.pallas_call(
            _rgba_drop_alpha_kernel,
            out_shape=jax.ShapeDtypeStruct((3, h, w), x.dtype),
            in_specs=[pl.BlockSpec(memory_space=pl.ANY)],
            out_specs=pl.BlockSpec(memory_space=pl.ANY),
            scratch_shapes=[pltpu.SemaphoreType.DMA(())],
            cost_estimate=pl.CostEstimate(
                flops=0, transcendentals=0, bytes_accessed=6 * plane_bytes),
        )(x)

    if c != 1:
        raise ValueError(f"Unsupported number of channels: {c}")

    # ---- C == 1 -------------------------------------------------------------
    if plane_bytes <= _SMALL_PLANE_BYTES:
        # Tiny planes: pure DMA, zero VMEM, minimal launch overhead.
        return pl.pallas_call(
            _broadcast_small_kernel,
            out_shape=jax.ShapeDtypeStruct((3, h, w), x.dtype),
            in_specs=[pl.BlockSpec(memory_space=pl.ANY)],
            out_specs=pl.BlockSpec(memory_space=pl.ANY),
            scratch_shapes=[pltpu.SemaphoreType.DMA((3,))],
            cost_estimate=pl.CostEstimate(
                flops=0, transcendentals=0, bytes_accessed=6 * plane_bytes),
        )(x)

    # Large planes: stage each row tile through VMEM once, write 3 planes.
    th = _row_tile(h, w, itemsize)
    grid = (pl.cdiv(h, th),)
    return pl.pallas_call(
        _broadcast_tiled_kernel,
        out_shape=jax.ShapeDtypeStruct((3, h, w), x.dtype),
        grid=grid,
        in_specs=[
            # Squeeze the size-1 channel dim; kernel sees a (TH, W) tile.
            pl.BlockSpec((None, th, w), lambda i: (0, i, 0)),
        ],
        out_specs=pl.BlockSpec((3, th, w), lambda i: (0, i, 0)),
        compiler_params=pltpu.CompilerParams(
            dimension_semantics=("parallel",)),
        cost_estimate=pl.CostEstimate(
            flops=0, transcendentals=0, bytes_accessed=4 * plane_bytes),
    )(x)


def _reference(x: jnp.ndarray) -> jnp.ndarray:
    c = x.shape[0]
    if c == 1:
        return jnp.broadcast_to(x, (3,) + x.shape[1:])
    if c == 4:
        return x[:3]
    return x


if __name__ == "__main__":
    key = jax.random.PRNGKey(0)
    k1, k3, k4, k5 = jax.random.split(key, 4)
    H, W = 16, 16

    cases = {
        # small planes -> pure-DMA paths
        "single_small": jax.random.uniform(k1, (1, H, W), dtype=jnp.float32),
        "rgb":          jax.random.uniform(k3, (3, H, W), dtype=jnp.float32),
        "rgba":         jax.random.uniform(k4, (4, H, W), dtype=jnp.float32),
        # larger plane (512 KiB) -> staged/tiled C==1 path
        "single_large": jax.random.uniform(k5, (1, 512, 256), dtype=jnp.float32),
    }

    ok = True
    for name, x in cases.items():
        y = jax.block_until_ready(channel_transform(x))
        y_ref = _reference(x)
        assert y.shape == (3,) + x.shape[1:], (name, y.shape)
        assert y.dtype == x.dtype, (name, y.dtype)
        if not jnp.allclose(y, y_ref):
            ok = False
            print(f"MISMATCH in case {name}")

    if ok:
        print("KERNEL_OK")
</pallas_src>

<mosaic_0001>
module attributes {stable_mosaic.version = 11 : i64} {
  func.func @_broadcast_small_kernel(%arg0: memref<1x16x16xf32, #tpu.memory_space<any>>, %arg1: memref<3x16x16xf32, #tpu.memory_space<any>>, %arg2: memref<3x!tpu.dma_semaphore, #tpu.memory_space<semaphore_mem>>) attributes {dimension_semantics = [], scalar_prefetch = 0 : i64, scratch_operands = 1 : i64, tpu.core_type = #tpu.core_type<tc>} {
    %c0_i32 = arith.constant 0 : i32
    %c0_i32_0 = arith.constant 0 : i32
    %c0_i32_1 = arith.constant 0 : i32
    %c0_i32_2 = arith.constant 0 : i32
    %c0_i32_3 = arith.constant 0 : i32
    %0 = tpu.memref_slice %arg0[%c0_i32, %c0_i32_2, %c0_i32_3] : memref<1x16x16xf32, #tpu.memory_space<any>> -> memref<1x16x16xf32, #tpu.memory_space<any>>
    %1 = tpu.memref_squeeze %0 : memref<1x16x16xf32, #tpu.memory_space<any>> -> memref<16x16xf32, #tpu.memory_space<any>>
    %c0_i32_4 = arith.constant 0 : i32
    %c0_i32_5 = arith.constant 0 : i32
    %2 = tpu.memref_slice %arg1[%c0_i32_0, %c0_i32_4, %c0_i32_5] : memref<3x16x16xf32, #tpu.memory_space<any>> -> memref<1x16x16xf32, #tpu.memory_space<any>>
    %3 = tpu.memref_squeeze %2 : memref<1x16x16xf32, #tpu.memory_space<any>> -> memref<16x16xf32, #tpu.memory_space<any>>
    %4 = tpu.memref_slice %arg2[%c0_i32_1] : memref<3x!tpu.dma_semaphore, #tpu.memory_space<semaphore_mem>> -> memref<1x!tpu.dma_semaphore, #tpu.memory_space<semaphore_mem>>
    %5 = tpu.memref_squeeze %4 : memref<1x!tpu.dma_semaphore, #tpu.memory_space<semaphore_mem>> -> memref<!tpu.dma_semaphore, #tpu.memory_space<semaphore_mem>>
    tpu.enqueue_dma source(%1 : memref<16x16xf32, #tpu.memory_space<any>>) target(%3 : memref<16x16xf32, #tpu.memory_space<any>>) target_semaphore(%5 : memref<!tpu.dma_semaphore, #tpu.memory_space<semaphore_mem>>)
    %c0_i32_6 = arith.constant 0 : i32
    %c1_i32 = arith.constant 1 : i32
    %c1_i32_7 = arith.constant 1 : i32
    %c0_i32_8 = arith.constant 0 : i32
    %c0_i32_9 = arith.constant 0 : i32
    %6 = tpu.memref_slice %arg0[%c0_i32_6, %c0_i32_8, %c0_i32_9] : memref<1x16x16xf32, #tpu.memory_space<any>> -> memref<1x16x16xf32, #tpu.memory_space<any>>
    %7 = tpu.memref_squeeze %6 : memref<1x16x16xf32, #tpu.memory_space<any>> -> memref<16x16xf32, #tpu.memory_space<any>>
    %c0_i32_10 = arith.constant 0 : i32
    %c0_i32_11 = arith.constant 0 : i32
    %8 = tpu.memref_slice %arg1[%c1_i32, %c0_i32_10, %c0_i32_11] : memref<3x16x16xf32, #tpu.memory_space<any>> -> memref<1x16x16xf32, #tpu.memory_space<any>>
    %9 = tpu.memref_squeeze %8 : memref<1x16x16xf32, #tpu.memory_space<any>> -> memref<16x16xf32, #tpu.memory_space<any>>
    %10 = tpu.memref_slice %arg2[%c1_i32_7] : memref<3x!tpu.dma_semaphore, #tpu.memory_space<semaphore_mem>> -> memref<1x!tpu.dma_semaphore, #tpu.memory_space<semaphore_mem>>
    %11 = tpu.memref_squeeze %10 : memref<1x!tpu.dma_semaphore, #tpu.memory_space<semaphore_mem>> -> memref<!tpu.dma_semaphore, #tpu.memory_space<semaphore_mem>>
    tpu.enqueue_dma source(%7 : memref<16x16xf32, #tpu.memory_space<any>>) target(%9 : memref<16x16xf32, #tpu.memory_space<any>>) target_semaphore(%11 : memref<!tpu.dma_semaphore, #tpu.memory_space<semaphore_mem>>)
    %c0_i32_12 = arith.constant 0 : i32
    %c2_i32 = arith.constant 2 : i32
    %c2_i32_13 = arith.constant 2 : i32
    %c0_i32_14 = arith.constant 0 : i32
    %c0_i32_15 = arith.constant 0 : i32
    %12 = tpu.memref_slice %arg0[%c0_i32_12, %c0_i32_14, %c0_i32_15] : memref<1x16x16xf32, #tpu.memory_space<any>> -> memref<1x16x16xf32, #tpu.memory_space<any>>
    %13 = tpu.memref_squeeze %12 : memref<1x16x16xf32, #tpu.memory_space<any>> -> memref<16x16xf32, #tpu.memory_space<any>>
    %c0_i32_16 = arith.constant 0 : i32
    %c0_i32_17 = arith.constant 0 : i32
    %14 = tpu.memref_slice %arg1[%c2_i32, %c0_i32_16, %c0_i32_17] : memref<3x16x16xf32, #tpu.memory_space<any>> -> memref<1x16x16xf32, #tpu.memory_space<any>>
    %15 = tpu.memref_squeeze %14 : memref<1x16x16xf32, #tpu.memory_space<any>> -> memref<16x16xf32, #tpu.memory_space<any>>
    %16 = tpu.memref_slice %arg2[%c2_i32_13] : memref<3x!tpu.dma_semaphore, #tpu.memory_space<semaphore_mem>> -> memref<1x!tpu.dma_semaphore, #tpu.memory_space<semaphore_mem>>
    %17 = tpu.memref_squeeze %16 : memref<1x!tpu.dma_semaphore, #tpu.memory_space<semaphore_mem>> -> memref<!tpu.dma_semaphore, #tpu.memory_space<semaphore_mem>>
    tpu.enqueue_dma source(%13 : memref<16x16xf32, #tpu.memory_space<any>>) target(%15 : memref<16x16xf32, #tpu.memory_space<any>>) target_semaphore(%17 : memref<!tpu.dma_semaphore, #tpu.memory_space<semaphore_mem>>)
    %c0_i32_18 = arith.constant 0 : i32
    %c0_i32_19 = arith.constant 0 : i32
    %c0_i32_20 = arith.constant 0 : i32
    %c0_i32_21 = arith.constant 0 : i32
    %c0_i32_22 = arith.constant 0 : i32
    %18 = tpu.memref_slice %arg0[%c0_i32_18, %c0_i32_21, %c0_i32_22] : memref<1x16x16xf32, #tpu.memory_space<any>> -> memref<1x16x16xf32, #tpu.memory_space<any>>
    %19 = tpu.memref_squeeze %18 : memref<1x16x16xf32, #tpu.memory_space<any>> -> memref<16x16xf32, #tpu.memory_space<any>>
    %c0_i32_23 = arith.constant 0 : i32
    %c0_i32_24 = arith.constant 0 : i32
    %20 = tpu.memref_slice %arg1[%c0_i32_19, %c0_i32_23, %c0_i32_24] : memref<3x16x16xf32, #tpu.memory_space<any>> -> memref<1x16x16xf32, #tpu.memory_space<any>>
    %21 = tpu.memref_squeeze %20 : memref<1x16x16xf32, #tpu.memory_space<any>> -> memref<16x16xf32, #tpu.memory_space<any>>
    %22 = tpu.memref_slice %arg2[%c0_i32_20] : memref<3x!tpu.dma_semaphore, #tpu.memory_space<semaphore_mem>> -> memref<1x!tpu.dma_semaphore, #tpu.memory_space<semaphore_mem>>
    %23 = tpu.memref_squeeze %22 : memref<1x!tpu.dma_semaphore, #tpu.memory_space<semaphore_mem>> -> memref<!tpu.dma_semaphore, #tpu.memory_space<semaphore_mem>>
    tpu.wait_dma2 semaphore(%23 : memref<!tpu.dma_semaphore, #tpu.memory_space<semaphore_mem>>) src(%19 : memref<16x16xf32, #tpu.memory_space<any>>) dst(%21 : memref<16x16xf32, #tpu.memory_space<any>>)
    %c0_i32_25 = arith.constant 0 : i32
    %c1_i32_26 = arith.constant 1 : i32
    %c1_i32_27 = arith.constant 1 : i32
    %c0_i32_28 = arith.constant 0 : i32
    %c0_i32_29 = arith.constant 0 : i32
    %24 = tpu.memref_slice %arg0[%c0_i32_25, %c0_i32_28, %c0_i32_29] : memref<1x16x16xf32, #tpu.memory_space<any>> -> memref<1x16x16xf32, #tpu.memory_space<any>>
    %25 = tpu.memref_squeeze %24 : memref<1x16x16xf32, #tpu.memory_space<any>> -> memref<16x16xf32, #tpu.memory_space<any>>
    %c0_i32_30 = arith.constant 0 : i32
    %c0_i32_31 = arith.constant 0 : i32
    %26 = tpu.memref_slice %arg1[%c1_i32_26, %c0_i32_30, %c0_i32_31] : memref<3x16x16xf32, #tpu.memory_space<any>> -> memref<1x16x16xf32, #tpu.memory_space<any>>
    %27 = tpu.memref_squeeze %26 : memref<1x16x16xf32, #tpu.memory_space<any>> -> memref<16x16xf32, #tpu.memory_space<any>>
    %28 = tpu.memref_slice %arg2[%c1_i32_27] : memref<3x!tpu.dma_semaphore, #tpu.memory_space<semaphore_mem>> -> memref<1x!tpu.dma_semaphore, #tpu.memory_space<semaphore_mem>>
    %29 = tpu.memref_squeeze %28 : memref<1x!tpu.dma_semaphore, #tpu.memory_space<semaphore_mem>> -> memref<!tpu.dma_semaphore, #tpu.memory_space<semaphore_mem>>
    tpu.wait_dma2 semaphore(%29 : memref<!tpu.dma_semaphore, #tpu.memory_space<semaphore_mem>>) src(%25 : memref<16x16xf32, #tpu.memory_space<any>>) dst(%27 : memref<16x16xf32, #tpu.memory_space<any>>)
    %c0_i32_32 = arith.constant 0 : i32
    %c2_i32_33 = arith.constant 2 : i32
    %c2_i32_34 = arith.constant 2 : i32
    %c0_i32_35 = arith.constant 0 : i32
    %c0_i32_36 = arith.constant 0 : i32
    %30 = tpu.memref_slice %arg0[%c0_i32_32, %c0_i32_35, %c0_i32_36] : memref<1x16x16xf32, #tpu.memory_space<any>> -> memref<1x16x16xf32, #tpu.memory_space<any>>
    %31 = tpu.memref_squeeze %30 : memref<1x16x16xf32, #tpu.memory_space<any>> -> memref<16x16xf32, #tpu.memory_space<any>>
    %c0_i32_37 = arith.constant 0 : i32
    %c0_i32_38 = arith.constant 0 : i32
    %32 = tpu.memref_slice %arg1[%c2_i32_33, %c0_i32_37, %c0_i32_38] : memref<3x16x16xf32, #tpu.memory_space<any>> -> memref<1x16x16xf32, #tpu.memory_space<any>>
    %33 = tpu.memref_squeeze %32 : memref<1x16x16xf32, #tpu.memory_space<any>> -> memref<16x16xf32, #tpu.memory_space<any>>
    %34 = tpu.memref_slice %arg2[%c2_i32_34] : memref<3x!tpu.dma_semaphore, #tpu.memory_space<semaphore_mem>> -> memref<1x!tpu.dma_semaphore, #tpu.memory_space<semaphore_mem>>
    %35 = tpu.memref_squeeze %34 : memref<1x!tpu.dma_semaphore, #tpu.memory_space<semaphore_mem>> -> memref<!tpu.dma_semaphore, #tpu.memory_space<semaphore_mem>>
    tpu.wait_dma2 semaphore(%35 : memref<!tpu.dma_semaphore, #tpu.memory_space<semaphore_mem>>) src(%31 : memref<16x16xf32, #tpu.memory_space<any>>) dst(%33 : memref<16x16xf32, #tpu.memory_space<any>>)
    return
  }
}

</mosaic_0001>

<llo_original>
// kernel: tpu_custom_call.1
$region0: #{tpu_custom_call.1}
  #allocation0 [shape = 'u32[]', space=smem, size = 0x4, offset = 0x4, fixed_abs, tag = 'smem constant byte address 0x4 - core index']
  #allocation1 [shape = 'u32[144,128]{1,0:T(1,128)}', space=vmem, size = 0x12000, scoped, tag = 'internal scratch']
  #allocation2 [shape = 's32[3]{0}', space=sflag, size = 0xc, scoped, tag = 'scratch operand']
  #allocation3 [shape = 's32[]', space=sflag, size = 0x4, offset = 0, fixed_abs, tag = 'sflag constant byte address 0x0 - dummy sync flag']
  #allocation4 [shape = 'u32[0]{0}', space=smem, size = 0, offset = 0, fixed_abs, tag = 'smem constant byte address 0x0 - null']
  #allocation5 [shape = 's32[]', space=sflag, size = 0x4, offset = 0, fixed_abs, tag = 'sflag constant byte address 0x0 - dummy sync flag']
  #allocation6 [shape = 'u32[0]{0}', space=smem, size = 0, offset = 0, fixed_abs, tag = 'smem constant byte address 0x0 - null']
  #allocation7 [shape = 's32[]', space=sflag, size = 0x4, offset = 0, fixed_abs, tag = 'sflag constant byte address 0x0 - dummy sync flag']
  #allocation8 [shape = 'u32[0]{0}', space=smem, size = 0, offset = 0, fixed_abs, tag = 'smem constant byte address 0x0 - null']
  %s0 = inlined_call_operand.hbm [shape: f32[1,16,16], index: 0, kind: input, shape index: {}]
  %s1 = inlined_call_operand.hbm [shape: f32[3,16,16], index: 1, kind: output, shape index: {}]
  %s2 = sld [smem:[#allocation0]]
  $region2: #{tpu_custom_call.1} parent=0
    _
  %s4 = ssub.s32 1, %s2
  %s5 = scalar_select 0, %s4, %s2
  %s7 = sshll.u32 1, 14
  %s8 = sxor.u32 4294967295, %s7
  %12 = dma.general %s0, 256, %s1, [#allocation2], 131072, [#allocation4], 0, 0
  %s13 = scalar_lea.hbm %s1, 256
  %s14 = scalar_lea.sflag [#allocation2], 1
  %s16 = sshll.u32 1, 14
  %s17 = sxor.u32 4294967295, %s16
  %21 = dma.general %s0, 256, %s13, %s14, 131072, [#allocation6], 0, 0
  %s22 = scalar_lea.hbm %s1, 512
  %s23 = scalar_lea.sflag [#allocation2], 2
  %s25 = sshll.u32 1, 14
  %s26 = sxor.u32 4294967295, %s25
  %30 = dma.general %s0, 256, %s22, %s23, 131072, [#allocation8], 0, 0
  %s31 = smul.u32 16, 1
  %s32 = sshll.u32 %s31, 4
  %33 = dma.done [#allocation2], %s32
  %s34 = sshll.u32 %s31, 4
  %35 = dma.done %s14, %s34
  %s36 = sshll.u32 %s31, 4
  %37 = dma.done %s23, %s36
  %38 = vsyncmov [#allocation2]
  %s39 = vpop.sfrf %38
  %p40 = scmp.eq.s32.totalorder %s39, 0
  %p41 = pneg %p40
  %43 = shalt.err (%p41)
  %s44 = scalar_lea.sflag [#allocation2], 1
  %45 = vsyncmov %s44
  %s46 = vpop.sfrf %45
  %p47 = scmp.eq.s32.totalorder %s46, 0
  %p48 = pneg %p47
  %50 = shalt.err (%p48)
  %s51 = scalar_lea.sflag [#allocation2], 2
  %52 = vsyncmov %s51
  %s53 = vpop.sfrf %52
  %p54 = scmp.eq.s32.totalorder %s53, 0
  %p55 = pneg %p54
  %57 = shalt.err (%p55)

</llo_original>
